<compile_context>
chip_gen: v6e
topology: v6e:2x2x1
jax: 0.10.0
libtpu: 0.0.40
codegen_flags: <defaults>
</compile_context>

<pallas_src>
import functools

import jax
import jax.numpy as jnp
from jax.experimental import pallas as pl
from jax.experimental.pallas import tpu as pltpu


# ---------------------------------------------------------------------------
# Fused kernel: all ConvBNReLURes1D blocks on one native-layout activation tile.
# ---------------------------------------------------------------------------
def _pos_extraction_kernel(x_ref, w1_ref, b1_ref, w2_ref, b2_ref, o_ref, *, blocks):
    # x_ref : (1, C, TILE)        activation tile, lane axis = points within batch b
    # w1_ref: (BLOCKS, Cmid, C)   bf16     b1_ref: (BLOCKS, Cmid, 1) f32
    # w2_ref: (BLOCKS, C, Cmid)   bf16     b2_ref: (BLOCKS, C, 1)    f32
    # o_ref : (1, C, TILE)
    x = x_ref[0]                                     # (C, TILE) f32
    for blk in range(blocks):                        # static unroll; activations stay on-chip
        # net1: Conv1d(k=1) + folded BN + ReLU.  bf16 MXU inputs, f32 accumulation.
        h = jnp.dot(w1_ref[blk], x.astype(jnp.bfloat16),
                    preferred_element_type=jnp.float32)
        h = jnp.maximum(h + b1_ref[blk], 0.0)
        # net2: Conv1d(k=1) + folded BN
        y = jnp.dot(w2_ref[blk], h.astype(jnp.bfloat16),
                    preferred_element_type=jnp.float32)
        y = y + b2_ref[blk]
        # residual + final ReLU (f32).  Large tiles are staged through Mosaic's
        # internal VMEM scratch automatically; tile bytes are capped below.
        x = jnp.maximum(y + x, 0.0)
    o_ref[0] = x.astype(o_ref.dtype)


# ---------------------------------------------------------------------------
# Tile sizing: byte-targeted, multiple of 128, exact divisor of the padded N.
# ---------------------------------------------------------------------------
_TARGET_TILE_BYTES = 2 * 1024 * 1024  # ~2 MiB per (C, tile) f32 activation buffer


def _choose_lane_tile(n_padded, channels, batch, itemsize=4):
    # n_padded is always a multiple of 128, so this always terminates at >= 128
    # and the chosen tile always divides n_padded exactly (no dropped columns).
    max_cols = max(128, (_TARGET_TILE_BYTES // (channels * itemsize)) // 128 * 128)
    if batch == 1 and n_padded >= 256:
        # Leave >= 2 lane tiles so the "parallel" grid can shard across v7x's
        # two TensorCores even with a single batch element.
        max_cols = max(128, min(max_cols, (n_padded // 2) // 128 * 128))
    tile = max(128, min(max_cols, n_padded) // 128 * 128)
    while n_padded % tile:
        tile -= 128
    return tile


# ---------------------------------------------------------------------------
# Wrapper: native (B, C, N) layout, single pallas_call over all blocks.
# ---------------------------------------------------------------------------
@jax.jit
def pos_extraction_forward(x, w1_all, b1_all, w2_all, b2_all):
    B, C, N = x.shape
    blocks, cmid, _ = w1_all.shape

    # bf16 MXU inputs (halves weight DMA bytes); biases stay f32.
    w1_bf = w1_all.astype(jnp.bfloat16)
    w2_bf = w2_all.astype(jnp.bfloat16)

    # Pad N up to a multiple of 128 so every store is an unmasked lane-dense vst.
    n_pad = (-N) % 128
    x_p = jnp.pad(x, ((0, 0), (0, 0), (0, n_pad))) if n_pad else x
    n_p = N + n_pad

    tile = _choose_lane_tile(n_p, C, B)
    grid = (B, n_p // tile)

    # 2 matmuls (2*Cmid*C flops each per column) + ~4 elementwise passes / block.
    flops = blocks * B * n_p * (4 * cmid * C + 4 * C)
    bytes_accessed = (2 * 4 * B * C * n_p                       # x in + out, f32
                      + blocks * (2 * 2 * cmid * C              # bf16 weights
                                  + 4 * (cmid + C)))            # f32 biases

    out = pl.pallas_call(
        functools.partial(_pos_extraction_kernel, blocks=blocks),
        out_shape=jax.ShapeDtypeStruct((B, C, n_p), x.dtype),
        grid=grid,
        in_specs=[
            pl.BlockSpec((1, C, tile), lambda b, t: (b, 0, t)),       # activation tile
            pl.BlockSpec((blocks, cmid, C), lambda b, t: (0, 0, 0)),  # resident weights
            pl.BlockSpec((blocks, cmid, 1), lambda b, t: (0, 0, 0)),
            pl.BlockSpec((blocks, C, cmid), lambda b, t: (0, 0, 0)),
            pl.BlockSpec((blocks, C, 1), lambda b, t: (0, 0, 0)),
        ],
        out_specs=pl.BlockSpec((1, C, tile), lambda b, t: (b, 0, t)),
        cost_estimate=pl.CostEstimate(flops=flops, transcendentals=0,
                                      bytes_accessed=bytes_accessed),
        compiler_params=pltpu.CompilerParams(
            # Both axes index independent points -> megacore-shardable on v7x.
            dimension_semantics=("parallel", "parallel"),
            # Safe on every generation (v5e scoped default is only 16 MiB);
            # comfortably covers 2x in + 2x out tiles + weights + intermediates.
            vmem_limit_bytes=32 * 1024 * 1024,
        ),
    )(x_p, w1_bf, b1_all, w2_bf, b2_all)

    return out[:, :, :N] if n_pad else out


# ---------------------------------------------------------------------------
# Parameter construction (deterministic, synthetic) + BN folding (eval mode).
# ---------------------------------------------------------------------------
def _fold_bn(conv_w, conv_b, gamma, beta, mean, var, eps=1e-5):
    # Eval-mode BatchNorm1d folded into the preceding 1x1 conv.
    scale = gamma / jnp.sqrt(var + eps)              # (Cout,)
    w_eff = conv_w * scale[:, None]                  # (Cout, Cin)
    b_eff = scale * (conv_b - mean) + beta           # (Cout,)
    return w_eff, b_eff[:, None]                     # bias as (Cout, 1)


def init_pos_extraction_params(key, channels, blocks=1, res_expansion=1):
    cmid = int(channels * res_expansion)
    w1s, b1s, w2s, b2s = [], [], [], []
    for _ in range(blocks):
        keys = jax.random.split(key, 11)
        key = keys[0]
        w1 = jax.random.normal(keys[1], (cmid, channels), jnp.float32) * 0.1
        cb1 = jax.random.normal(keys[2], (cmid,), jnp.float32) * 0.1
        g1 = 1.0 + 0.1 * jax.random.normal(keys[3], (cmid,), jnp.float32)
        be1 = 0.1 * jax.random.normal(keys[4], (cmid,), jnp.float32)
        m1 = 0.1 * jax.random.normal(keys[5], (cmid,), jnp.float32)
        v1 = 1.0 + 0.1 * jnp.abs(jax.random.normal(keys[6], (cmid,), jnp.float32))

        w2 = jax.random.normal(keys[7], (channels, cmid), jnp.float32) * 0.1
        cb2 = jax.random.normal(keys[8], (channels,), jnp.float32) * 0.1
        g2 = 1.0 + 0.1 * jax.random.normal(keys[9], (channels,), jnp.float32)
        be2 = 0.1 * jax.random.normal(keys[10], (channels,), jnp.float32)
        m2 = jnp.zeros((channels,), jnp.float32)
        v2 = jnp.ones((channels,), jnp.float32)

        w1e, b1e = _fold_bn(w1, cb1, g1, be1, m1, v1)
        w2e, b2e = _fold_bn(w2, cb2, g2, be2, m2, v2)
        w1s.append(w1e); b1s.append(b1e); w2s.append(w2e); b2s.append(b2e)

    # Stacked over blocks so the fused kernel loads everything in one call.
    return (jnp.stack(w1s), jnp.stack(b1s), jnp.stack(w2s), jnp.stack(b2s))


# ---------------------------------------------------------------------------
# Pure-JAX f32 reference (same folded-BN eval semantics) for a sanity check.
# ---------------------------------------------------------------------------
def _ref_forward(x, w1_all, b1_all, w2_all, b2_all):
    out = x
    for blk in range(w1_all.shape[0]):
        h = jnp.einsum('oc,bcn->bon', w1_all[blk], out) + b1_all[blk][None]
        h = jnp.maximum(h, 0.0)
        y = jnp.einsum('oc,bcn->bon', w2_all[blk], h) + b2_all[blk][None]
        out = jnp.maximum(y + out, 0.0)
    return out


if __name__ == "__main__":
    # input[b, d, g]: batch=2, channels=32, points(seq)=128, blocks=2
    B, C, N, BLOCKS = 2, 32, 128, 2

    key = jax.random.PRNGKey(0)
    kx, kp = jax.random.split(key)
    x = jax.random.normal(kx, (B, C, N), jnp.float32)

    w1_all, b1_all, w2_all, b2_all = init_pos_extraction_params(
        kp, channels=C, blocks=BLOCKS, res_expansion=1)

    out = pos_extraction_forward(x, w1_all, b1_all, w2_all, b2_all)
    out = jax.block_until_ready(out)

    ref = _ref_forward(x, w1_all, b1_all, w2_all, b2_all)
    assert out.shape == (B, C, N)
    # bf16 MXU inputs with f32 accumulation -> looser tolerance than pure-f32.
    assert jnp.allclose(out, ref, atol=2e-2, rtol=2e-2), "mismatch vs reference"

    print("KERNEL_OK")
</pallas_src>

<mosaic_0001>
module attributes {stable_mosaic.version = 11 : i64} {
  func.func @_pos_extraction_kernel(%arg0: i32, %arg1: i32, %arg2: memref<1x32x128xf32, #tpu.memory_space<vmem>>, %arg3: memref<2x32x32xbf16, #tpu.memory_space<vmem>>, %arg4: memref<2x32x1xf32, #tpu.memory_space<vmem>>, %arg5: memref<2x32x32xbf16, #tpu.memory_space<vmem>>, %arg6: memref<2x32x1xf32, #tpu.memory_space<vmem>>, %arg7: memref<1x32x128xf32, #tpu.memory_space<vmem>>) attributes {dimension_semantics = [#tpu.dimension_semantics<parallel>, #tpu.dimension_semantics<parallel>], iteration_bounds = array<i64: 2, 1>, scalar_prefetch = 0 : i64, scratch_operands = 0 : i64, tpu.core_type = #tpu.core_type<tc>, window_params = [{transform_indices = @transform_0, window_bounds = array<i64: 1, 32, 128>}, {pipeline_mode = #tpu.pipeline_mode<synchronous>, transform_indices = @transform_1, window_bounds = array<i64: 2, 32, 32>}, {pipeline_mode = #tpu.pipeline_mode<synchronous>, transform_indices = @transform_2, window_bounds = array<i64: 2, 32, 1>}, {pipeline_mode = #tpu.pipeline_mode<synchronous>, transform_indices = @transform_3, window_bounds = array<i64: 2, 32, 32>}, {pipeline_mode = #tpu.pipeline_mode<synchronous>, transform_indices = @transform_4, window_bounds = array<i64: 2, 32, 1>}, {transform_indices = @transform_5, window_bounds = array<i64: 1, 32, 128>}]} {
    %c0 = arith.constant 0 : index
    %c0_0 = arith.constant 0 : index
    %c0_1 = arith.constant 0 : index
    %0 = vector.load %arg2[%c0, %c0_0, %c0_1] : memref<1x32x128xf32, #tpu.memory_space<vmem>>, vector<1x32x128xf32>
    %1 = vector.shape_cast %0 : vector<1x32x128xf32> to vector<32x128xf32>
    %c0_2 = arith.constant 0 : index
    %c0_3 = arith.constant 0 : index
    %c0_4 = arith.constant 0 : index
    %2 = vector.load %arg3[%c0_2, %c0_3, %c0_4] : memref<2x32x32xbf16, #tpu.memory_space<vmem>>, vector<1x32x32xbf16>
    %3 = vector.shape_cast %2 : vector<1x32x32xbf16> to vector<32x32xbf16>
    %4 = arith.truncf %1 : vector<32x128xf32> to vector<32x128xbf16>
    %cst = arith.constant dense<0.000000e+00> : vector<32x128xf32>
    %5 = tpu.matmul %3, %4, %cst {dimension_numbers = #tpu.dot_dimension_numbers<[1], [0], [0], [1], [0, 0, 1, 1], [], []>} : vector<32x32xbf16>, vector<32x128xbf16>, vector<32x128xf32> -> vector<32x128xf32>
    %c0_5 = arith.constant 0 : index
    %c0_6 = arith.constant 0 : index
    %c0_7 = arith.constant 0 : index
    %6 = vector.load %arg4[%c0_5, %c0_6, %c0_7] : memref<2x32x1xf32, #tpu.memory_space<vmem>>, vector<1x32x1xf32>
    %7 = vector.shape_cast %6 : vector<1x32x1xf32> to vector<32x1xf32>
    %8 = vector.broadcast %7 : vector<32x1xf32> to vector<32x128xf32>
    %9 = arith.addf %5, %8 : vector<32x128xf32>
    %cst_8 = arith.constant 0.000000e+00 : f32
    %10 = vector.broadcast %cst_8 : f32 to vector<32x128xf32>
    %11 = arith.maximumf %9, %10 : vector<32x128xf32>
    %c0_9 = arith.constant 0 : index
    %c0_10 = arith.constant 0 : index
    %c0_11 = arith.constant 0 : index
    %12 = vector.load %arg5[%c0_9, %c0_10, %c0_11] : memref<2x32x32xbf16, #tpu.memory_space<vmem>>, vector<1x32x32xbf16>
    %13 = vector.shape_cast %12 : vector<1x32x32xbf16> to vector<32x32xbf16>
    %14 = arith.truncf %11 : vector<32x128xf32> to vector<32x128xbf16>
    %cst_12 = arith.constant dense<0.000000e+00> : vector<32x128xf32>
    %15 = tpu.matmul %13, %14, %cst_12 {dimension_numbers = #tpu.dot_dimension_numbers<[1], [0], [0], [1], [0, 0, 1, 1], [], []>} : vector<32x32xbf16>, vector<32x128xbf16>, vector<32x128xf32> -> vector<32x128xf32>
    %c0_13 = arith.constant 0 : index
    %c0_14 = arith.constant 0 : index
    %c0_15 = arith.constant 0 : index
    %16 = vector.load %arg6[%c0_13, %c0_14, %c0_15] : memref<2x32x1xf32, #tpu.memory_space<vmem>>, vector<1x32x1xf32>
    %17 = vector.shape_cast %16 : vector<1x32x1xf32> to vector<32x1xf32>
    %18 = vector.broadcast %17 : vector<32x1xf32> to vector<32x128xf32>
    %19 = arith.addf %15, %18 : vector<32x128xf32>
    %20 = arith.addf %19, %1 : vector<32x128xf32>
    %cst_16 = arith.constant 0.000000e+00 : f32
    %21 = vector.broadcast %cst_16 : f32 to vector<32x128xf32>
    %22 = arith.maximumf %20, %21 : vector<32x128xf32>
    %c1 = arith.constant 1 : index
    %c0_17 = arith.constant 0 : index
    %c0_18 = arith.constant 0 : index
    %23 = vector.load %arg3[%c1, %c0_17, %c0_18] : memref<2x32x32xbf16, #tpu.memory_space<vmem>>, vector<1x32x32xbf16>
    %24 = vector.shape_cast %23 : vector<1x32x32xbf16> to vector<32x32xbf16>
    %25 = arith.truncf %22 : vector<32x128xf32> to vector<32x128xbf16>
    %cst_19 = arith.constant dense<0.000000e+00> : vector<32x128xf32>
    %26 = tpu.matmul %24, %25, %cst_19 {dimension_numbers = #tpu.dot_dimension_numbers<[1], [0], [0], [1], [0, 0, 1, 1], [], []>} : vector<32x32xbf16>, vector<32x128xbf16>, vector<32x128xf32> -> vector<32x128xf32>
    %c1_20 = arith.constant 1 : index
    %c0_21 = arith.constant 0 : index
    %c0_22 = arith.constant 0 : index
    %27 = vector.load %arg4[%c1_20, %c0_21, %c0_22] : memref<2x32x1xf32, #tpu.memory_space<vmem>>, vector<1x32x1xf32>
    %28 = vector.shape_cast %27 : vector<1x32x1xf32> to vector<32x1xf32>
    %29 = vector.broadcast %28 : vector<32x1xf32> to vector<32x128xf32>
    %30 = arith.addf %26, %29 : vector<32x128xf32>
    %cst_23 = arith.constant 0.000000e+00 : f32
    %31 = vector.broadcast %cst_23 : f32 to vector<32x128xf32>
    %32 = arith.maximumf %30, %31 : vector<32x128xf32>
    %c1_24 = arith.constant 1 : index
    %c0_25 = arith.constant 0 : index
    %c0_26 = arith.constant 0 : index
    %33 = vector.load %arg5[%c1_24, %c0_25, %c0_26] : memref<2x32x32xbf16, #tpu.memory_space<vmem>>, vector<1x32x32xbf16>
    %34 = vector.shape_cast %33 : vector<1x32x32xbf16> to vector<32x32xbf16>
    %35 = arith.truncf %32 : vector<32x128xf32> to vector<32x128xbf16>
    %cst_27 = arith.constant dense<0.000000e+00> : vector<32x128xf32>
    %36 = tpu.matmul %34, %35, %cst_27 {dimension_numbers = #tpu.dot_dimension_numbers<[1], [0], [0], [1], [0, 0, 1, 1], [], []>} : vector<32x32xbf16>, vector<32x128xbf16>, vector<32x128xf32> -> vector<32x128xf32>
    %c1_28 = arith.constant 1 : index
    %c0_29 = arith.constant 0 : index
    %c0_30 = arith.constant 0 : index
    %37 = vector.load %arg6[%c1_28, %c0_29, %c0_30] : memref<2x32x1xf32, #tpu.memory_space<vmem>>, vector<1x32x1xf32>
    %38 = vector.shape_cast %37 : vector<1x32x1xf32> to vector<32x1xf32>
    %39 = vector.broadcast %38 : vector<32x1xf32> to vector<32x128xf32>
    %40 = arith.addf %36, %39 : vector<32x128xf32>
    %41 = arith.addf %40, %22 : vector<32x128xf32>
    %cst_31 = arith.constant 0.000000e+00 : f32
    %42 = vector.broadcast %cst_31 : f32 to vector<32x128xf32>
    %43 = arith.maximumf %41, %42 : vector<32x128xf32>
    %c0_32 = arith.constant 0 : index
    %c0_33 = arith.constant 0 : index
    %c0_34 = arith.constant 0 : index
    %44 = vector.load %arg7[%c0_32, %c0_33, %c0_34] : memref<1x32x128xf32, #tpu.memory_space<vmem>>, vector<1x32x128xf32>
    %45 = vector.shape_cast %44 : vector<1x32x128xf32> to vector<32x128xf32>
    %46 = vector.shape_cast %43 : vector<32x128xf32> to vector<1x32x128xf32>
    tpu.vector_store %arg7[%c0_32, %c0_33, %c0_34], %46 {strides = array<i32>} : memref<1x32x128xf32, #tpu.memory_space<vmem>>, vector<1x32x128xf32>,
    return
  }
  func.func @transform_0(%arg0: i32, %arg1: i32) -> (i32, i32, i32) {
    %c0_i32 = arith.constant 0 : i32
    %c0_i32_0 = arith.constant 0 : i32
    return %arg0, %c0_i32, %arg1 : i32, i32, i32
  }
  func.func @transform_1(%arg0: i32, %arg1: i32) -> (i32, i32, i32) {
    %c0_i32 = arith.constant 0 : i32
    %c0_i32_0 = arith.constant 0 : i32
    %c0_i32_1 = arith.constant 0 : i32
    %c0_i32_2 = arith.constant 0 : i32
    return %c0_i32, %c0_i32_0, %c0_i32_1 : i32, i32, i32
  }
  func.func @transform_2(%arg0: i32, %arg1: i32) -> (i32, i32, i32) {
    %c0_i32 = arith.constant 0 : i32
    %c0_i32_0 = arith.constant 0 : i32
    %c0_i32_1 = arith.constant 0 : i32
    %c0_i32_2 = arith.constant 0 : i32
    return %c0_i32, %c0_i32_0, %c0_i32_1 : i32, i32, i32
  }
  func.func @transform_3(%arg0: i32, %arg1: i32) -> (i32, i32, i32) {
    %c0_i32 = arith.constant 0 : i32
    %c0_i32_0 = arith.constant 0 : i32
    %c0_i32_1 = arith.constant 0 : i32
    %c0_i32_2 = arith.constant 0 : i32
    return %c0_i32, %c0_i32_0, %c0_i32_1 : i32, i32, i32
  }
  func.func @transform_4(%arg0: i32, %arg1: i32) -> (i32, i32, i32) {
    %c0_i32 = arith.constant 0 : i32
    %c0_i32_0 = arith.constant 0 : i32
    %c0_i32_1 = arith.constant 0 : i32
    %c0_i32_2 = arith.constant 0 : i32
    return %c0_i32, %c0_i32_0, %c0_i32_1 : i32, i32, i32
  }
  func.func @transform_5(%arg0: i32, %arg1: i32) -> (i32, i32, i32) {
    %c0_i32 = arith.constant 0 : i32
    %c0_i32_0 = arith.constant 0 : i32
    return %arg0, %c0_i32, %arg1 : i32, i32, i32
  }
}

</mosaic_0001>

<llo_original>
// kernel: pos_extraction_forward.1
$region0: #{pos_extraction_forward.1}
  #allocation0 [shape = 'u32[]', space=smem, size = 0x4, offset = 0x4, fixed_abs, tag = 'smem constant byte address 0x4 - core index']
  #allocation1 [shape = 'u32[144,128]{1,0:T(1,128)}', space=vmem, size = 0x12000, scoped, tag = 'internal scratch']
  %s0 = inlined_call_operand.vmem [shape: f32[2,32,128], index: 0, kind: input, shape index: {}]
  %s1 = inlined_call_operand.vmem [shape: bf16[2,32,32], index: 1, kind: input, shape index: {}]
  %s2 = inlined_call_operand.vmem [shape: f32[2,32,1], index: 2, kind: input, shape index: {}]
  %s3 = inlined_call_operand.vmem [shape: bf16[2,32,32], index: 3, kind: input, shape index: {}]
  %s4 = inlined_call_operand.vmem [shape: f32[2,32,1], index: 4, kind: input, shape index: {}]
  %s5 = inlined_call_operand.hbm [shape: f32[2,32,128], index: 5, kind: output, shape index: {}]
  %s6 = sld [smem:[#allocation0]]
  $region53: #{pos_extraction_forward.1} parent=0
    _
  %s8 = ssub.s32 1, %s6
  %s9 = scalar_select 0, %s8, %s6
  $region1: #{pos_extraction_forward.1} parent=0
    #allocation2 [shape = 'u8[32768]{0}', space=vmem, size = 0x8000, scoped, tag = 'output window, operand 0']
    #allocation3 [shape = 's32[2]{0}', space=sflag, size = 0x8, scoped, tag = 'scoped memory for pos_extraction_forward.1']
    %10 = vsyncpa [#allocation3], 0
    %s11 = scalar_lea.sflag [#allocation3], 1
    %12 = vsyncpa %s11, 0
    loop: start=0, step=1, limit=4
    $region2: #{pos_extraction_forward.1} parent=1 // loop_pre_header
      _
    $region3: #{pos_extraction_forward.1} parent=1 // loop_header
      %s14 = sphi 0, %s18
      %p15 = scmp.ge.s32.totalorder %s14, 4
      %s21 = sphi 0, %s33
      %s22 = sphi 0, %s29
      %s23 = sphi 0, %s21
      %s24 = sphi 0, %s22
      %s25 = sphi 0, %s23
      %s26 = sphi 0, %s24
      %s38 = sphi 0, %s40
      %s41 = sphi 0, %s38
      %s42 = sphi 0, %s41
      %s58 = sphi 0, %s42
      %s62 = sphi 0, %s62
      %s64 = sphi 0, %s62
      %s65 = sphi 0, %s64
      %s79 = sphi 0, %s65
      %s83 = sphi 0, %s83
      %s85 = sphi 0, %s83
      %s86 = sphi 0, %s85
      %s100 = sphi 0, %s86
      %s104 = sphi 0, %s104
      %s106 = sphi 0, %s104
      %s107 = sphi 0, %s106
      %s121 = sphi 0, %s107
      %s125 = sphi 0, %s125
      %s127 = sphi 0, %s125
      %s128 = sphi 0, %s127
      %s142 = sphi 0, %s128
      %s150 = sphi 0, %s152
      %s153 = sphi 0, %s150
      %s154 = sphi 0, %s153
      %s170 = sphi 0, %s154
    $region4: #{pos_extraction_forward.1} parent=1 // loop_header_branch
      %17 = sbr.rel (%p15) target = $region8
    $region5: #{pos_extraction_forward.1} parent=1 // loop_body
      %s19 = ssub.s32 %s14, 1
      %s20 = ssub.s32 %s14, 2
      %s27 = sadd.s32 1, %s22
      %p28 = scmp.ge.s32.totalorder %s27, 1
      %s29 = scalar_select %p28, 0, %s27
      %s30 = sadd.s32 1, %s21
      %s31 = scalar_select %p28, %s30, %s21
      %p32 = scmp.ge.s32.totalorder %s31, 2
      %s33 = scalar_select %p32, 0, %s31
      %s34 = ssub.s32 %s21, %s33
      %s35 = ssub.s32 %s22, %s29
      %s36 = sor.u32 %s34, %s35
      %p37 = scmp.eq.s32.totalorder %s36, 0
      %s39 = sadd.s32 %s38, 1
      %s40 = scalar_select %p37, %s38, %s39
      %p43 = pneg %p37
      %p44 = scmp.eq.s32.totalorder %s14, 1
      %p45 = por %p43, %p44
      %p46 = scmp.ne.s32.totalorder %s38, %s41
      %p47 = scmp.eq.s32.totalorder %s14, 0
      %p48 = por %p46, %p47
      %p49 = scmp.ne.s32.totalorder %s38, %s41
      %p50 = scmp.eq.s32.totalorder %s19, 1
      %p51 = por %p49, %p50
      %p52 = scmp.ne.s32.totalorder %s41, %s42
      %p53 = scmp.eq.s32.totalorder %s19, 0
      %p54 = por %p52, %p53
      %p55 = scmp.ne.s32.totalorder %s41, %s42
      %p56 = scmp.eq.s32.totalorder %s20, 1
      %p57 = por %p55, %p56
      %p59 = scmp.ne.s32.totalorder %s42, %s58
      %p60 = scmp.eq.s32.totalorder %s20, 0
      %p61 = por %p59, %p60
      %s63 = sadd.s32 %s62, 1
      %p66 = scmp.eq.s32.totalorder %s14, 1
      %p67 = scmp.ne.s32.totalorder %s62, %s64
      %p68 = scmp.eq.s32.totalorder %s14, 0
      %p69 = por %p67, %p68
      %p70 = scmp.ne.s32.totalorder %s62, %s64
      %p71 = scmp.eq.s32.totalorder %s19, 1
      %p72 = por %p70, %p71
      %p73 = scmp.ne.s32.totalorder %s64, %s65
      %p74 = scmp.eq.s32.totalorder %s19, 0
      %p75 = por %p73, %p74
      %p76 = scmp.ne.s32.totalorder %s64, %s65
      %p77 = scmp.eq.s32.totalorder %s20, 1
      %p78 = por %p76, %p77
      %p80 = scmp.ne.s32.totalorder %s65, %s79
      %p81 = scmp.eq.s32.totalorder %s20, 0
      %p82 = por %p80, %p81
      %s84 = sadd.s32 %s83, 1
      %p87 = scmp.eq.s32.totalorder %s14, 1
      %p88 = scmp.ne.s32.totalorder %s83, %s85
      %p89 = scmp.eq.s32.totalorder %s14, 0
      %p90 = por %p88, %p89
      %p91 = scmp.ne.s32.totalorder %s83, %s85
      %p92 = scmp.eq.s32.totalorder %s19, 1
      %p93 = por %p91, %p92
      %p94 = scmp.ne.s32.totalorder %s85, %s86
      %p95 = scmp.eq.s32.totalorder %s19, 0
      %p96 = por %p94, %p95
      %p97 = scmp.ne.s32.totalorder %s85, %s86
      %p98 = scmp.eq.s32.totalorder %s20, 1
      %p99 = por %p97, %p98
      %p101 = scmp.ne.s32.totalorder %s86, %s100
      %p102 = scmp.eq.s32.totalorder %s20, 0
      %p103 = por %p101, %p102
      %s105 = sadd.s32 %s104, 1
      %p108 = scmp.eq.s32.totalorder %s14, 1
      %p109 = scmp.ne.s32.totalorder %s104, %s106
      %p110 = scmp.eq.s32.totalorder %s14, 0
      %p111 = por %p109, %p110
      %p112 = scmp.ne.s32.totalorder %s104, %s106
      %p113 = scmp.eq.s32.totalorder %s19, 1
      %p114 = por %p112, %p113
      %p115 = scmp.ne.s32.totalorder %s106, %s107
      %p116 = scmp.eq.s32.totalorder %s19, 0
      %p117 = por %p115, %p116
      %p118 = scmp.ne.s32.totalorder %s106, %s107
      %p119 = scmp.eq.s32.totalorder %s20, 1
      %p120 = por %p118, %p119
      %p122 = scmp.ne.s32.totalorder %s107, %s121
      %p123 = scmp.eq.s32.totalorder %s20, 0
      %p124 = por %p122, %p123
      %s126 = sadd.s32 %s125, 1
      %p129 = scmp.eq.s32.totalorder %s14, 1
      %p130 = scmp.ne.s32.totalorder %s125, %s127
      %p131 = scmp.eq.s32.totalorder %s14, 0
      %p132 = por %p130, %p131
      %p133 = scmp.ne.s32.totalorder %s125, %s127
      %p134 = scmp.eq.s32.totalorder %s19, 1
      %p135 = por %p133, %p134
      %p136 = scmp.ne.s32.totalorder %s127, %s128
      %p137 = scmp.eq.s32.totalorder %s19, 0
      %p138 = por %p136, %p137
      %p139 = scmp.ne.s32.totalorder %s127, %s128
      %p140 = scmp.eq.s32.totalorder %s20, 1
      %p141 = por %p139, %p140
      %p143 = scmp.ne.s32.totalorder %s128, %s142
      %p144 = scmp.eq.s32.totalorder %s20, 0
      %p145 = por %p143, %p144
      %s146 = ssub.s32 %s21, %s33
      %s147 = ssub.s32 %s22, %s29
      %s148 = sor.u32 %s146, %s147
      %p149 = scmp.eq.s32.totalorder %s148, 0
      %s151 = sadd.s32 %s150, 1
      %s152 = scalar_select %p149, %s150, %s151
      %p155 = pneg %p149
      %p156 = scmp.eq.s32.totalorder %s14, 1
      %p157 = por %p155, %p156
      %p158 = scmp.ne.s32.totalorder %s150, %s153
      %p159 = scmp.eq.s32.totalorder %s14, 0
      %p160 = por %p158, %p159
      %p161 = scmp.ne.s32.totalorder %s150, %s153
      %p162 = scmp.eq.s32.totalorder %s19, 1
      %p163 = por %p161, %p162
      %p164 = scmp.ne.s32.totalorder %s153, %s154
      %p165 = scmp.eq.s32.totalorder %s19, 0
      %p166 = por %p164, %p165
      %p167 = scmp.ne.s32.totalorder %s153, %s154
      %p168 = scmp.eq.s32.totalorder %s20, 1
      %p169 = por %p167, %p168
      %p171 = scmp.ne.s32.totalorder %s154, %s170
      %p172 = scmp.eq.s32.totalorder %s20, 0
      %p173 = por %p171, %p172
      %p174 = scmp.le.s32.totalorder 1, %s14
      %p175 = scmp.lt.s32.totalorder %s14, 3
      %p176 = pnand %p174, %p175
      %p177 = pneg %p176
      // Predicated region
      $region9: #{pos_extraction_forward.1} parent=5 // pred_check
        _
      $region10: #{pos_extraction_forward.1} parent=5 // pred_check_branch
        %179 = sbr.rel (%p176) target = $region12
      $region11: #{pos_extraction_forward.1} parent=5 // pred_region
        %s180 = ssub.s32 %s14, 1
        // Predicated region
        $region13: #{pos_extraction_forward.1} parent=11 // pred_check
          %p181 = pneg %p75
        $region14: #{pos_extraction_forward.1} parent=11 // pred_check_branch
          %183 = sbr.rel (%p181) target = $region16
        $region15: #{pos_extraction_forward.1} parent=11 // pred_region
          _
        $region16: #{pos_extraction_forward.1} parent=11 // pred_fallthru
          _
        // Predicated region
        $region17: #{pos_extraction_forward.1} parent=11 // pred_check
          %p184 = pneg %p96
        $region18: #{pos_extraction_forward.1} parent=11 // pred_check_branch
          %186 = sbr.rel (%p184) target = $region20
        $region19: #{pos_extraction_forward.1} parent=11 // pred_region
          _
        $region20: #{pos_extraction_forward.1} parent=11 // pred_fallthru
          _
        // Predicated region
        $region21: #{pos_extraction_forward.1} parent=11 // pred_check
          %p187 = pneg %p117
        $region22: #{pos_extraction_forward.1} parent=11 // pred_check_branch
          %189 = sbr.rel (%p187) target = $region24
        $region23: #{pos_extraction_forward.1} parent=11 // pred_region
          _
        $region24: #{pos_extraction_forward.1} parent=11 // pred_fallthru
          _
        // Predicated region
        $region25: #{pos_extraction_forward.1} parent=11 // pred_check
          %p190 = pneg %p138
        $region26: #{pos_extraction_forward.1} parent=11 // pred_check_branch
          %192 = sbr.rel (%p190) target = $region28
        $region27: #{pos_extraction_forward.1} parent=11 // pred_region
          _
        $region28: #{pos_extraction_forward.1} parent=11 // pred_fallthru
          _
      $region12: #{pos_extraction_forward.1} parent=5 // pred_fallthru
        _
      %p193 = scmp.lt.s32.totalorder %s14, 2
      // Predicated region
      $region29: #{pos_extraction_forward.1} parent=5 // pred_check
        %p194 = pneg %p193
      $region30: #{pos_extraction_forward.1} parent=5 // pred_check_branch
        %196 = sbr.rel (%p194) target = $region32
      $region31: #{pos_extraction_forward.1} parent=5 // pred_region
        // Predicated region
        $region33: #{pos_extraction_forward.1} parent=31 // pred_check
          %p197 = pneg %p48
        $region34: #{pos_extraction_forward.1} parent=31 // pred_check_branch
          %199 = sbr.rel (%p197) target = $region36
        $region35: #{pos_extraction_forward.1} parent=31 // pred_region
          %p200 = scmp.lt.s32.totalorder %s21, 1
          %s201 = scalar_select %p200, %s21, 1
          %p202 = scmp.lt.s32.totalorder %s22, 0
          %s203 = scalar_select %p202, %s22, 0
          %s204 = smul.addr %s201, 4
          %s205 = sadd.s32 %s203, %s204
          %s206 = smul.addr %s205, 8
          %s207 = scalar_lea.vmem %s0, %s206
        $region36: #{pos_extraction_forward.1} parent=31 // pred_fallthru
          _
      $region32: #{pos_extraction_forward.1} parent=5 // pred_fallthru
        _
      %p208 = scmp.le.s32.totalorder 1, %s14
      %p209 = scmp.lt.s32.totalorder %s14, 3
      %p210 = pnand %p208, %p209
      %p211 = pneg %p210
      // Predicated region
      $region37: #{pos_extraction_forward.1} parent=5 // pred_check
        _
      $region38: #{pos_extraction_forward.1} parent=5 // pred_check_branch
        %213 = sbr.rel (%p210) target = $region40
      $region39: #{pos_extraction_forward.1} parent=5 // pred_region
        %s214 = ssub.s32 %s14, 1
        %p215 = scmp.lt.s32.totalorder %s23, 1
        %s216 = scalar_select %p215, %s23, 1
        %p217 = scmp.lt.s32.totalorder %s24, 0
        %s218 = scalar_select %p217, %s24, 0
        %s219 = smul.addr %s216, 4
        %s220 = sadd.s32 %s218, %s219
        %s221 = smul.addr %s220, 8
        %s222 = scalar_lea.vmem %s0, %s221
        %p223 = pneg %p54
        %p224 = pneg %p51
        %p225 = pneg %p75
        %p226 = pneg %p72
        %p227 = pneg %p96
        %p228 = pneg %p93
        %p229 = pneg %p117
        %p230 = pneg %p114
        %p231 = pneg %p138
        %p232 = pneg %p135
        %p233 = pneg %p166
        %p234 = pneg %p163
        %s235 = sand.u32 %s153, 1
        %s236 = scalar_lea.sflag [#allocation3], %s235
        %s237 = sand.u32 %s153, 1
        %s238 = smul.addr %s237, 32
        %s239 = scalar_lea.vmem [#allocation2], %s238
        %p240 = scmp.lt.s32.totalorder %s23, 1
        %s241 = scalar_select %p240, %s23, 1
        %p242 = scmp.lt.s32.totalorder %s24, 0
        %s243 = scalar_select %p242, %s24, 0
        %s244 = smul.addr %s241, 4
        %s245 = sadd.s32 %s243, %s244
        %s246 = smul.addr %s245, 8
        %s247 = scalar_lea.vmem %s0, %s246
        %v249 = vld [vmem:[%s247] sm:$0xff]
        %v250 = vld [vmem:[%s247 + $0x8] sm:$0xff]
        %v251 = vld [vmem:[%s247 + $0x10] sm:$0xff]
        %v252 = vld [vmem:[%s247 + $0x18] sm:$0xff]
        %v253 = vld [vmem:[%s1] sm:$0xf]
        %v254 = vld [vmem:[%s1 + $0x4] sm:$0xf]
        %v255 = vld [vmem:[%s1 + $0x8] sm:$0xf]
        %v256 = vld [vmem:[%s1 + $0xc] sm:$0xf]
        %v257 = vpack.c.bf16 %v250, %v249
        %v258 = vpack.c.bf16 %v252, %v251
        %v259 = vld [vmem:[%s2] sm:$0xff]
        %v260 = vld [vmem:[%s2 + $0x8] sm:$0xff]
        %v261 = vld [vmem:[%s2 + $0x10] sm:$0xff]
        %v262 = vld [vmem:[%s2 + $0x18] sm:$0xff]
        %264 = vset.pattern.permute.xlu0 0
        %265 = vperm.xlu0 %264, %v259
        %v266 = vpop.permute.xlu0 %265
        %269 = vset.pattern.permute.xlu0 0
        %270 = vperm.xlu0 %269, %v260
        %v271 = vpop.permute.xlu0 %270
        %274 = vset.pattern.permute.xlu0 0
        %275 = vperm.xlu0 %274, %v261
        %v276 = vpop.permute.xlu0 %275
        %279 = vset.pattern.permute.xlu0 0
        %280 = vperm.xlu0 %279, %v262
        %v281 = vpop.permute.xlu0 %280
        %v287 = vunpack.c.l.b16 %v253
        %v288 = vunpack.c.l.b16 %v254
        %v289 = vunpack.c.l.b16 %v255
        %v290 = vunpack.c.l.b16 %v256
        %v291 = vpack.c.b16 %v288, %v287
        %v292 = vpack.c.b16 %v290, %v289
        %vm293 = vcmask 261120
        %v295 = vsel %vm293, %v291, 0
        %v298 = vsel %vm293, %v292, 0
        %300 = vmatprep.subr.bf16.mxu0 0
        %301 = vmatpush1.bf16.msra.mxu0 0
        %302 = vmatprep.subr.bf16.mxu0 0
        %303 = vmatpush1.bf16.msra.mxu0 0
        %304 = vmatprep.subr.bf16.mxu0 0
        %305 = vmatpush1.bf16.msra.mxu0 0
        %306 = vmatprep.subr.bf16.mxu0 0
        %307 = vmatpush1.bf16.msra.mxu0 0
        %308 = vmatprep.subr.bf16.mxu0 0
        %309 = vmatpush1.bf16.msra.mxu0 0
        %310 = vmatprep.subr.bf16.mxu0 0
        %311 = vmatpush1.bf16.msra.mxu0 0
        %312 = vmatprep.subr.bf16.mxu0 0
        %313 = vmatpush1.bf16.msra.mxu0 %v258
        %314 = vmatprep.subr.bf16.mxu0 0
        %315 = vmatpush1.bf16.msra.mxu0 %v257
        %316 = vmatprep.subr.bf16.mxu0 0
        %317 = vmatpush2.bf16.msra.mxu0 0
        %318 = vmatprep.subr.bf16.mxu0 0
        %319 = vmatpush2.bf16.msra.mxu0 0
        %320 = vmatprep.subr.bf16.mxu0 0
        %321 = vmatpush2.bf16.msra.mxu0 0
        %322 = vmatprep.subr.bf16.mxu0 0
        %323 = vmatpush2.bf16.msra.mxu0 0
        %324 = vmatprep.subr.bf16.mxu0 0
        %325 = vmatpush2.bf16.msra.mxu0 0
        %326 = vmatprep.subr.bf16.mxu0 0
        %327 = vmatpush2.bf16.msra.mxu0 0
        %328 = vmatprep.subr.bf16.mxu0 0
        %329 = vmatpush2.bf16.msra.mxu0 0
        %330 = vmatprep.subr.bf16.mxu0 0
        %331 = vmatpush2.bf16.msra.mxu0 0
        %332 = vmatprep.mubr.bf16.mxu0 0
        %333 = vmatmul.mubr.bf16.gmra.mxu0 %v295
        %v334 = vpop.f32.mrf.mxu0
        %v335 = vadd.f32 %v266, %v334
        %v336 = vpop.f32.mrf.mxu0
        %v337 = vpop.f32.mrf.mxu0
        %v338 = vadd.f32 %v271, %v337
        %v339 = vpop.f32.mrf.mxu0
        %340 = vmatprep.mubr.bf16.mxu0 0
        %341 = vmatmul.mubr.bf16.gmra.mxu0 %v298
        %v342 = vpop.f32.mrf.mxu0
        %v343 = vadd.f32 %v276, %v342
        %v344 = vpop.f32.mrf.mxu0
        %v345 = vpop.f32.mrf.mxu0
        %v346 = vadd.f32 %v281, %v345
        %v347 = vpop.f32.mrf.mxu0
        %348 = vdwg.mxu0
        %v349 = vmax.f32 %v335, 0.0
        %v350 = vmax.f32 %v338, 0.0
        %v351 = vmax.f32 %v343, 0.0
        %v352 = vmax.f32 %v346, 0.0
        %v353 = vld [vmem:[%s3] sm:$0xf]
        %v354 = vld [vmem:[%s3 + $0x4] sm:$0xf]
        %v355 = vld [vmem:[%s3 + $0x8] sm:$0xf]
        %v356 = vld [vmem:[%s3 + $0xc] sm:$0xf]
        %v357 = vpack.c.bf16 %v350, %v349
        %v358 = vpack.c.bf16 %v352, %v351
        %v359 = vld [vmem:[%s4] sm:$0xff]
        %v360 = vld [vmem:[%s4 + $0x8] sm:$0xff]
        %v361 = vld [vmem:[%s4 + $0x10] sm:$0xff]
        %v362 = vld [vmem:[%s4 + $0x18] sm:$0xff]
        %364 = vset.pattern.permute.xlu0 0
        %365 = vperm.xlu0 %364, %v359
        %v366 = vpop.permute.xlu0 %365
        %369 = vset.pattern.permute.xlu0 0
        %370 = vperm.xlu0 %369, %v360
        %v371 = vpop.permute.xlu0 %370
        %374 = vset.pattern.permute.xlu0 0
        %375 = vperm.xlu0 %374, %v361
        %v376 = vpop.permute.xlu0 %375
        %379 = vset.pattern.permute.xlu0 0
        %380 = vperm.xlu0 %379, %v362
        %v381 = vpop.permute.xlu0 %380
        %v387 = vunpack.c.l.b16 %v353
        %v388 = vunpack.c.l.b16 %v354
        %v389 = vunpack.c.l.b16 %v355
        %v390 = vunpack.c.l.b16 %v356
        %v391 = vpack.c.b16 %v388, %v387
        %v392 = vpack.c.b16 %v390, %v389
        %v394 = vsel %vm293, %v391, 0
        %v397 = vsel %vm293, %v392, 0
        %399 = vmatprep.subr.bf16.mxu0 0
        %400 = vmatpush1.bf16.msra.mxu0 0
        %401 = vmatprep.subr.bf16.mxu0 0
        %402 = vmatpush1.bf16.msra.mxu0 0
        %403 = vmatprep.subr.bf16.mxu0 0
        %404 = vmatpush1.bf16.msra.mxu0 0
        %405 = vmatprep.subr.bf16.mxu0 0
        %406 = vmatpush1.bf16.msra.mxu0 0
        %407 = vmatprep.subr.bf16.mxu0 0
        %408 = vmatpush1.bf16.msra.mxu0 0
        %409 = vmatprep.subr.bf16.mxu0 0
        %410 = vmatpush1.bf16.msra.mxu0 0
        %411 = vmatprep.subr.bf16.mxu0 0
        %412 = vmatpush1.bf16.msra.mxu0 %v358
        %413 = vmatprep.subr.bf16.mxu0 0
        %414 = vmatpush1.bf16.msra.mxu0 %v357
        %415 = vmatprep.subr.bf16.mxu0 0
        %416 = vmatpush2.bf16.msra.mxu0 0
        %417 = vmatprep.subr.bf16.mxu0 0
        %418 = vmatpush2.bf16.msra.mxu0 0
        %419 = vmatprep.subr.bf16.mxu0 0
        %420 = vmatpush2.bf16.msra.mxu0 0
        %421 = vmatprep.subr.bf16.mxu0 0
        %422 = vmatpush2.bf16.msra.mxu0 0
        %423 = vmatprep.subr.bf16.mxu0 0
        %424 = vmatpush2.bf16.msra.mxu0 0
        %425 = vmatprep.subr.bf16.mxu0 0
        %426 = vmatpush2.bf16.msra.mxu0 0
        %427 = vmatprep.subr.bf16.mxu0 0
        %428 = vmatpush2.bf16.msra.mxu0 0
        %429 = vmatprep.subr.bf16.mxu0 0
        %430 = vmatpush2.bf16.msra.mxu0 0
        %431 = vmatprep.mubr.bf16.mxu0 0
        %432 = vmatmul.mubr.bf16.gmra.mxu0 %v394
        %v433 = vpop.f32.mrf.mxu0
        %v434 = vadd.f32 %v366, %v433
        %v435 = vpop.f32.mrf.mxu0
        %v436 = vpop.f32.mrf.mxu0
        %v437 = vadd.f32 %v371, %v436
        %v438 = vpop.f32.mrf.mxu0
        %439 = vmatprep.mubr.bf16.mxu0 0
        %440 = vmatmul.mubr.bf16.gmra.mxu0 %v397
        %v441 = vpop.f32.mrf.mxu0
        %v442 = vadd.f32 %v376, %v441
        %v443 = vpop.f32.mrf.mxu0
        %v444 = vpop.f32.mrf.mxu0
        %v445 = vadd.f32 %v381, %v444
        %v446 = vpop.f32.mrf.mxu0
        %447 = vdwg.mxu0
        %v448 = vadd.f32 %v434, %v249
        %v449 = vadd.f32 %v437, %v250
        %v450 = vadd.f32 %v442, %v251
        %v451 = vadd.f32 %v445, %v252
        %v452 = vmax.f32 %v448, 0.0
        %v453 = vmax.f32 %v449, 0.0
        %v454 = vmax.f32 %v450, 0.0
        %v455 = vmax.f32 %v451, 0.0
        %s456 = scalar_lea.vmem %s1, 16
        %v457 = vld [vmem:[%s456] sm:$0xf]
        %v458 = vld [vmem:[%s456 + $0x4] sm:$0xf]
        %v459 = vld [vmem:[%s456 + $0x8] sm:$0xf]
        %v460 = vld [vmem:[%s456 + $0xc] sm:$0xf]
        %v461 = vpack.c.bf16 %v453, %v452
        %v462 = vpack.c.bf16 %v455, %v454
        %s463 = scalar_lea.vmem %s2, 32
        %v464 = vld [vmem:[%s463] sm:$0xff]
        %v465 = vld [vmem:[%s463 + $0x8] sm:$0xff]
        %v466 = vld [vmem:[%s463 + $0x10] sm:$0xff]
        %v467 = vld [vmem:[%s463 + $0x18] sm:$0xff]
        %469 = vset.pattern.permute.xlu0 0
        %470 = vperm.xlu0 %469, %v464
        %v471 = vpop.permute.xlu0 %470
        %474 = vset.pattern.permute.xlu0 0
        %475 = vperm.xlu0 %474, %v465
        %v476 = vpop.permute.xlu0 %475
        %479 = vset.pattern.permute.xlu0 0
        %480 = vperm.xlu0 %479, %v466
        %v481 = vpop.permute.xlu0 %480
        %484 = vset.pattern.permute.xlu0 0
        %485 = vperm.xlu0 %484, %v467
        %v486 = vpop.permute.xlu0 %485
        %v492 = vunpack.c.l.b16 %v457
        %v493 = vunpack.c.l.b16 %v458
        %v494 = vunpack.c.l.b16 %v459
        %v495 = vunpack.c.l.b16 %v460
        %v496 = vpack.c.b16 %v493, %v492
        %v497 = vpack.c.b16 %v495, %v494
        %v499 = vsel %vm293, %v496, 0
        %v502 = vsel %vm293, %v497, 0
        %504 = vmatprep.subr.bf16.mxu0 0
        %505 = vmatpush1.bf16.msra.mxu0 0
        %506 = vmatprep.subr.bf16.mxu0 0
        %507 = vmatpush1.bf16.msra.mxu0 0
        %508 = vmatprep.subr.bf16.mxu0 0
        %509 = vmatpush1.bf16.msra.mxu0 0
        %510 = vmatprep.subr.bf16.mxu0 0
        %511 = vmatpush1.bf16.msra.mxu0 0
        %512 = vmatprep.subr.bf16.mxu0 0
        %513 = vmatpush1.bf16.msra.mxu0 0
        %514 = vmatprep.subr.bf16.mxu0 0
        %515 = vmatpush1.bf16.msra.mxu0 0
        %516 = vmatprep.subr.bf16.mxu0 0
        %517 = vmatpush1.bf16.msra.mxu0 %v462
        %518 = vmatprep.subr.bf16.mxu0 0
        %519 = vmatpush1.bf16.msra.mxu0 %v461
        %520 = vmatprep.subr.bf16.mxu0 0
        %521 = vmatpush2.bf16.msra.mxu0 0
        %522 = vmatprep.subr.bf16.mxu0 0
        %523 = vmatpush2.bf16.msra.mxu0 0
        %524 = vmatprep.subr.bf16.mxu0 0
        %525 = vmatpush2.bf16.msra.mxu0 0
        %526 = vmatprep.subr.bf16.mxu0 0
        %527 = vmatpush2.bf16.msra.mxu0 0
        %528 = vmatprep.subr.bf16.mxu0 0
        %529 = vmatpush2.bf16.msra.mxu0 0
        %530 = vmatprep.subr.bf16.mxu0 0
        %531 = vmatpush2.bf16.msra.mxu0 0
        %532 = vmatprep.subr.bf16.mxu0 0
        %533 = vmatpush2.bf16.msra.mxu0 0
        %534 = vmatprep.subr.bf16.mxu0 0
        %535 = vmatpush2.bf16.msra.mxu0 0
        %536 = vmatprep.mubr.bf16.mxu0 0
        %537 = vmatmul.mubr.bf16.gmra.mxu0 %v499
        %v538 = vpop.f32.mrf.mxu0
        %v539 = vadd.f32 %v471, %v538
        %v540 = vpop.f32.mrf.mxu0
        %v541 = vpop.f32.mrf.mxu0
        %v542 = vadd.f32 %v476, %v541
        %v543 = vpop.f32.mrf.mxu0
        %544 = vmatprep.mubr.bf16.mxu0 0
        %545 = vmatmul.mubr.bf16.gmra.mxu0 %v502
        %v546 = vpop.f32.mrf.mxu0
        %v547 = vadd.f32 %v481, %v546
        %v548 = vpop.f32.mrf.mxu0
        %v549 = vpop.f32.mrf.mxu0
        %v550 = vadd.f32 %v486, %v549
        %v551 = vpop.f32.mrf.mxu0
        %552 = vdwg.mxu0
        %v553 = vmax.f32 %v539, 0.0
        %v554 = vmax.f32 %v542, 0.0
        %v555 = vmax.f32 %v547, 0.0
        %v556 = vmax.f32 %v550, 0.0
        %s557 = scalar_lea.vmem %s3, 16
        %v558 = vld [vmem:[%s557] sm:$0xf]
        %v559 = vld [vmem:[%s557 + $0x4] sm:$0xf]
        %v560 = vld [vmem:[%s557 + $0x8] sm:$0xf]
        %v561 = vld [vmem:[%s557 + $0xc] sm:$0xf]
        %v562 = vpack.c.bf16 %v554, %v553
        %v563 = vpack.c.bf16 %v556, %v555
        %s564 = scalar_lea.vmem %s4, 32
        %v565 = vld [vmem:[%s564] sm:$0xff]
        %v566 = vld [vmem:[%s564 + $0x8] sm:$0xff]
        %v567 = vld [vmem:[%s564 + $0x10] sm:$0xff]
        %v568 = vld [vmem:[%s564 + $0x18] sm:$0xff]
        %570 = vset.pattern.permute.xlu0 0
        %571 = vperm.xlu0 %570, %v565
        %v572 = vpop.permute.xlu0 %571
        %575 = vset.pattern.permute.xlu0 0
        %576 = vperm.xlu0 %575, %v566
        %v577 = vpop.permute.xlu0 %576
        %580 = vset.pattern.permute.xlu0 0
        %581 = vperm.xlu0 %580, %v567
        %v582 = vpop.permute.xlu0 %581
        %585 = vset.pattern.permute.xlu0 0
        %586 = vperm.xlu0 %585, %v568
        %v587 = vpop.permute.xlu0 %586
        %v593 = vunpack.c.l.b16 %v558
        %v594 = vunpack.c.l.b16 %v559
        %v595 = vunpack.c.l.b16 %v560
        %v596 = vunpack.c.l.b16 %v561
        %v597 = vpack.c.b16 %v594, %v593
        %v598 = vpack.c.b16 %v596, %v595
        %v600 = vsel %vm293, %v597, 0
        %v603 = vsel %vm293, %v598, 0
        %605 = vmatprep.subr.bf16.mxu0 0
        %606 = vmatpush1.bf16.msra.mxu0 0
        %607 = vmatprep.subr.bf16.mxu0 0
        %608 = vmatpush1.bf16.msra.mxu0 0
        %609 = vmatprep.subr.bf16.mxu0 0
        %610 = vmatpush1.bf16.msra.mxu0 0
        %611 = vmatprep.subr.bf16.mxu0 0
        %612 = vmatpush1.bf16.msra.mxu0 0
        %613 = vmatprep.subr.bf16.mxu0 0
        %614 = vmatpush1.bf16.msra.mxu0 0
        %615 = vmatprep.subr.bf16.mxu0 0
        %616 = vmatpush1.bf16.msra.mxu0 0
        %617 = vmatprep.subr.bf16.mxu0 0
        %618 = vmatpush1.bf16.msra.mxu0 %v563
        %619 = vmatprep.subr.bf16.mxu0 0
        %620 = vmatpush1.bf16.msra.mxu0 %v562
        %621 = vmatprep.subr.bf16.mxu0 0
        %622 = vmatpush2.bf16.msra.mxu0 0
        %623 = vmatprep.subr.bf16.mxu0 0
        %624 = vmatpush2.bf16.msra.mxu0 0
        %625 = vmatprep.subr.bf16.mxu0 0
        %626 = vmatpush2.bf16.msra.mxu0 0
        %627 = vmatprep.subr.bf16.mxu0 0
        %628 = vmatpush2.bf16.msra.mxu0 0
        %629 = vmatprep.subr.bf16.mxu0 0
        %630 = vmatpush2.bf16.msra.mxu0 0
        %631 = vmatprep.subr.bf16.mxu0 0
        %632 = vmatpush2.bf16.msra.mxu0 0
        %633 = vmatprep.subr.bf16.mxu0 0
        %634 = vmatpush2.bf16.msra.mxu0 0
        %635 = vmatprep.subr.bf16.mxu0 0
        %636 = vmatpush2.bf16.msra.mxu0 0
        %637 = vmatprep.mubr.bf16.mxu0 0
        %638 = vmatmul.mubr.bf16.gmra.mxu0 %v600
        %v639 = vpop.f32.mrf.mxu0
        %v640 = vadd.f32 %v572, %v639
        %v641 = vpop.f32.mrf.mxu0
        %v642 = vpop.f32.mrf.mxu0
        %v643 = vadd.f32 %v577, %v642
        %v644 = vpop.f32.mrf.mxu0
        %645 = vmatprep.mubr.bf16.mxu0 0
        %646 = vmatmul.mubr.bf16.gmra.mxu0 %v603
        %v647 = vpop.f32.mrf.mxu0
        %v648 = vadd.f32 %v582, %v647
        %v649 = vpop.f32.mrf.mxu0
        %v650 = vpop.f32.mrf.mxu0
        %v651 = vadd.f32 %v587, %v650
        %v652 = vpop.f32.mrf.mxu0
        %653 = vdwg.mxu0
        %v654 = vadd.f32 %v640, %v452
        %v655 = vadd.f32 %v643, %v453
        %v656 = vadd.f32 %v648, %v454
        %v657 = vadd.f32 %v651, %v455
        %v658 = vmax.f32 %v654, 0.0
        %v659 = vmax.f32 %v655, 0.0
        %v660 = vmax.f32 %v656, 0.0
        %v661 = vmax.f32 %v657, 0.0
        %662 = vst [vmem:[%s239] sm:$0xff] %v658
        %663 = vst [vmem:[%s239 + $0x8] sm:$0xff] %v659
        %664 = vst [vmem:[%s239 + $0x10] sm:$0xff] %v660
        %665 = vst [vmem:[%s239 + $0x18] sm:$0xff] %v661
        %s666 = sand.u32 %s153, 1
        %s667 = scalar_lea.sflag [#allocation3], %s666
        %s668 = sand.u32 %s153, 1
        %s669 = smul.addr %s668, 32
        %s670 = scalar_lea.vmem [#allocation2], %s669
        // Predicated region
        $region41: #{pos_extraction_forward.1} parent=39 // pred_check
          %p671 = pneg %p163
        $region42: #{pos_extraction_forward.1} parent=39 // pred_check_branch
          %673 = sbr.rel (%p671) target = $region44
        $region43: #{pos_extraction_forward.1} parent=39 // pred_region
          %s675 = ssub.s32 512, 512
          %676 = vsyncadd %s667, %s675
          %s677 = smul.addr %s23, 4
          %s678 = sadd.s32 %s24, %s677
          %s679 = smul.addr %s678, 128
          %s680 = scalar_lea.hbm %s5, %s679
          %s681 = sshll.u32 %s670, 4
          %s682 = int_to_ptr.vmem [resolvable:$true] %s681
          %687 = dma.vmem_to_hbm [thread:$0]  %s682, 512, %s680, %s667, 128, 128, 8
        $region44: #{pos_extraction_forward.1} parent=39 // pred_fallthru
          _
      $region40: #{pos_extraction_forward.1} parent=5 // pred_fallthru
        _
      %p688 = scmp.le.s32.totalorder 2, %s14
      // Predicated region
      $region45: #{pos_extraction_forward.1} parent=5 // pred_check
        %p689 = pneg %p688
      $region46: #{pos_extraction_forward.1} parent=5 // pred_check_branch
        %691 = sbr.rel (%p689) target = $region48
      $region47: #{pos_extraction_forward.1} parent=5 // pred_region
        %s692 = ssub.s32 %s14, 2
        // Predicated region
        $region49: #{pos_extraction_forward.1} parent=47 // pred_check
          %p693 = pneg %p169
        $region50: #{pos_extraction_forward.1} parent=47 // pred_check_branch
          %695 = sbr.rel (%p693) target = $region52
        $region51: #{pos_extraction_forward.1} parent=47 // pred_region
          %s696 = sand.u32 %s154, 1
          %s697 = scalar_lea.sflag [#allocation3], %s696
          %s698 = sand.u32 %s154, 1
          %s699 = smul.addr %s698, 32
          %s700 = scalar_lea.vmem [#allocation2], %s699
          %701 = dma.done %s697, 512
        $region52: #{pos_extraction_forward.1} parent=47 // pred_fallthru
          _
      $region48: #{pos_extraction_forward.1} parent=5 // pred_fallthru
        _
    $region6: #{pos_extraction_forward.1} parent=1 // loop_footer
      %s18 = sadd.s32 1, %s14
    $region7: #{pos_extraction_forward.1} parent=1 // loop_footer_branch
      %13 = sbr.rel target = $region3
    $region8: #{pos_extraction_forward.1} parent=1 // loop_exit
      _
    %702 = vsyncpa [#allocation3], 1
    %s703 = scalar_lea.sflag [#allocation3], 1
    %704 = vsyncpa %s703, 1

</llo_original>
